<compile_context>
chip_gen: v5e
topology: v5e:2x2
jax: 0.10.0
libtpu: 0.0.40
codegen_flags: <defaults>
</compile_context>

<pallas_src>
import functools
import math

import jax
import jax.numpy as jnp
from jax.experimental import pallas as pl
from jax.experimental.pallas import tpu as pltpu


def _round_up(x, m):
    return (x + m - 1) // m * m


def _pick_tile(dim, preferred, align):
    """Pad `dim` to an (8,128)-legal size and pick a tile that divides it."""
    p = _round_up(dim, align)
    if p <= preferred:
        return p, p
    t = (preferred // align) * align
    while p % t != 0:
        t -= align
    return p, t


# ---------------------------------------------------------------------------
# Linear: x @ W^T + b  (canonical tiled matmul, P1 + P3 accumulator pattern)
# ---------------------------------------------------------------------------
def _linear_kernel(x_ref, w_ref, b_ref, o_ref, acc_ref):
    kk = pl.program_id(2)

    @pl.when(kk == 0)
    def _():
        acc_ref[...] = jnp.zeros_like(acc_ref)

    acc_ref[...] += jnp.dot(x_ref[...], w_ref[...],
                            preferred_element_type=jnp.float32)

    @pl.when(kk == pl.num_programs(2) - 1)
    def _():
        o_ref[...] = (acc_ref[...] + b_ref[...]).astype(o_ref.dtype)


def linear_pallas(x, w, b=None, *, tm_pref=256, tn_pref=256, tk_pref=512):
    """x: (M, K); w: (N, K) torch nn.Linear layout; b: (N,) or None. Returns (M, N) f32."""
    M, K = x.shape
    N = w.shape[0]
    if b is None:
        b = jnp.zeros((N,), jnp.float32)

    Mp, tm = _pick_tile(M, tm_pref, 8)
    Kp, tk = _pick_tile(K, tk_pref, 128)
    Np, tn = _pick_tile(N, tn_pref, 128)

    xp = jnp.pad(x.astype(jnp.float32), ((0, Mp - M), (0, Kp - K)))
    wp = jnp.pad(w.T.astype(jnp.float32), ((0, Kp - K), (0, Np - N)))
    bp = jnp.pad(b.astype(jnp.float32).reshape(1, N), ((0, 0), (0, Np - N)))

    out = pl.pallas_call(
        _linear_kernel,
        out_shape=jax.ShapeDtypeStruct((Mp, Np), jnp.float32),
        grid_spec=pltpu.PrefetchScalarGridSpec(
            num_scalar_prefetch=0,
            grid=(Mp // tm, Np // tn, Kp // tk),
            in_specs=[
                pl.BlockSpec((tm, tk), lambda i, j, kk: (i, kk)),
                pl.BlockSpec((tk, tn), lambda i, j, kk: (kk, j)),
                pl.BlockSpec((1, tn), lambda i, j, kk: (0, j)),
            ],
            out_specs=pl.BlockSpec((tm, tn), lambda i, j, kk: (i, j)),
            scratch_shapes=[pltpu.VMEM((tm, tn), jnp.float32)],
        ),
        compiler_params=pltpu.CompilerParams(
            dimension_semantics=("parallel", "parallel", "arbitrary")),
    )(xp, wp, bp)
    return out[:M, :N]


# ---------------------------------------------------------------------------
# Fused attention core: score = qx @ kx^T (opt. scaled), softmax over dim 0
# (the n_head*mb axis — torch quirk), output = score @ kx.  Gridded over q rows;
# kx block index is constant so it stays VMEM-resident across grid steps.
# ---------------------------------------------------------------------------
def _attn_core_kernel(q_ref, k_ref, o_ref, s_ref, *, scale):
    q = q_ref[...]          # (B, tq, H) f32
    k = k_ref[...]          # (B, Lk, H) f32
    s = jnp.einsum('bqd,bkd->bqk', q, k, preferred_element_type=jnp.float32)
    if scale != 1.0:
        s = s * scale
    # torch quirk kept: F.softmax(score, dim=0) normalizes over the head*batch axis.
    m = jnp.max(s, axis=0, keepdims=True)
    e = jnp.exp(s - m)
    p = e / jnp.sum(e, axis=0, keepdims=True)
    s_ref[...] = p.astype(s_ref.dtype)
    o_ref[...] = jnp.einsum('bqk,bkd->bqd', p, k,
                            preferred_element_type=jnp.float32).astype(o_ref.dtype)


def attention_core(qx, kx, *, scale=1.0, tq_pref=512):
    B, Lq, H = qx.shape
    _, Lk, _ = kx.shape
    Lqp, tq = _pick_tile(Lq, tq_pref, 8)
    qp = jnp.pad(qx.astype(jnp.float32), ((0, 0), (0, Lqp - Lq), (0, 0)))
    kf = kx.astype(jnp.float32)

    out, score = pl.pallas_call(
        functools.partial(_attn_core_kernel, scale=float(scale)),
        out_shape=(jax.ShapeDtypeStruct((B, Lqp, H), jnp.float32),
                   jax.ShapeDtypeStruct((B, Lqp, Lk), jnp.float32)),
        grid_spec=pltpu.PrefetchScalarGridSpec(
            num_scalar_prefetch=0,
            grid=(Lqp // tq,),
            in_specs=[
                pl.BlockSpec((B, tq, H), lambda i: (0, i, 0)),
                pl.BlockSpec((B, Lk, H), lambda i: (0, 0, 0)),   # resident across steps
            ],
            out_specs=(pl.BlockSpec((B, tq, H), lambda i: (0, i, 0)),
                       pl.BlockSpec((B, tq, Lk), lambda i: (0, i, 0))),
        ),
        compiler_params=pltpu.CompilerParams(
            dimension_semantics=("parallel",)),
    )(qp, kf)
    return out[:, :Lq, :], score[:, :Lq, :]


# ---------------------------------------------------------------------------
# Module wrapper (mirrors Attention.forward)
# ---------------------------------------------------------------------------
def init_attention_params(key, embed_dim, hidden_dim, out_dim, n_head,
                          score_function='dot_product'):
    ks = jax.random.split(key, 7)

    def lin(kw, kb, out_f, in_f):
        stdv = 1.0 / math.sqrt(in_f)
        w = jax.random.uniform(kw, (out_f, in_f), jnp.float32, -stdv, stdv)
        b = jax.random.uniform(kb, (out_f,), jnp.float32, -stdv, stdv)
        return w, b

    w_k, b_k = lin(ks[0], ks[1], n_head * hidden_dim, embed_dim)
    w_q, b_q = lin(ks[2], ks[3], n_head * hidden_dim, embed_dim)
    w_p, b_p = lin(ks[4], ks[5], out_dim, n_head * hidden_dim)
    params = dict(w_k=w_k, b_k=b_k, w_q=w_q, b_q=b_q, w_proj=w_p, b_proj=b_p)
    stdv = 1.0 / math.sqrt(hidden_dim)
    if score_function == 'bi_linear':
        params['weight'] = jax.random.uniform(ks[6], (hidden_dim, hidden_dim),
                                              jnp.float32, -stdv, stdv)
    else:
        params['weight'] = None
    return params


def attention_forward(k, q, params, *, n_head, hidden_dim,
                      score_function='dot_product'):
    if q.ndim == 2:
        q = q[:, None, :]
    if k.ndim == 2:
        k = k[:, None, :]
    mb, k_len, embed_dim = k.shape
    q_len = q.shape[1]

    # w_k / w_q projections (Pallas tiled matmul) + torch head split/permute.
    kx = linear_pallas(k.reshape(mb * k_len, embed_dim), params['w_k'], params['b_k'])
    qx = linear_pallas(q.reshape(mb * q_len, embed_dim), params['w_q'], params['b_q'])
    kx = kx.reshape(mb, k_len, n_head, hidden_dim).transpose(2, 0, 1, 3) \
           .reshape(n_head * mb, k_len, hidden_dim)
    qx = qx.reshape(mb, q_len, n_head, hidden_dim).transpose(2, 0, 1, 3) \
           .reshape(n_head * mb, q_len, hidden_dim)

    if score_function == 'dot_product':
        q_in, scale = qx, 1.0
    elif score_function == 'scaled_dot_product':
        q_in, scale = qx, 1.0 / math.sqrt(hidden_dim)
    elif score_function == 'bi_linear':
        qw = linear_pallas(qx.reshape(-1, hidden_dim), params['weight'].T)
        q_in, scale = qw.reshape(n_head * mb, q_len, hidden_dim), 1.0
    else:
        # TODO(synk): 'mlp' score_function (tanh(cat(kx,qx) @ weight)) not implemented as a Pallas kernel.
        raise NotImplementedError(score_function)

    out, score = attention_core(q_in, kx, scale=scale)

    # torch: cat(split(output, mb, dim=0), dim=-1) -> (mb, q_len, n_head*hidden)
    out = out.reshape(n_head, mb, q_len, hidden_dim).transpose(1, 2, 0, 3) \
             .reshape(mb, q_len, n_head * hidden_dim)
    output = linear_pallas(out.reshape(mb * q_len, n_head * hidden_dim),
                           params['w_proj'], params['b_proj'])
    output = output.reshape(mb, q_len, -1)
    # TODO(synk): training-mode dropout (p>0) not implemented; module default p=0 / eval is identity.
    return output, score


# ---------------------------------------------------------------------------
# Plain-JAX reference mirroring the PyTorch module (for the correctness check)
# ---------------------------------------------------------------------------
def _reference_forward(k, q, params, *, n_head, hidden_dim,
                       score_function='dot_product'):
    if q.ndim == 2:
        q = q[:, None, :]
    if k.ndim == 2:
        k = k[:, None, :]
    mb, k_len, _ = k.shape
    q_len = q.shape[1]
    kx = k @ params['w_k'].T + params['b_k']
    qx = q @ params['w_q'].T + params['b_q']
    kx = kx.reshape(mb, k_len, n_head, hidden_dim).transpose(2, 0, 1, 3) \
           .reshape(n_head * mb, k_len, hidden_dim)
    qx = qx.reshape(mb, q_len, n_head, hidden_dim).transpose(2, 0, 1, 3) \
           .reshape(n_head * mb, q_len, hidden_dim)
    if score_function == 'dot_product':
        score = jnp.einsum('bqd,bkd->bqk', qx, kx)
    elif score_function == 'scaled_dot_product':
        score = jnp.einsum('bqd,bkd->bqk', qx, kx) / math.sqrt(hidden_dim)
    elif score_function == 'bi_linear':
        score = jnp.einsum('bqd,bkd->bqk', qx @ params['weight'], kx)
    else:
        raise NotImplementedError(score_function)
    score = jax.nn.softmax(score, axis=0)     # torch quirk: dim=0
    out = jnp.einsum('bqk,bkd->bqd', score, kx)
    out = out.reshape(n_head, mb, q_len, hidden_dim).transpose(1, 2, 0, 3) \
             .reshape(mb, q_len, n_head * hidden_dim)
    output = out @ params['w_proj'].T + params['b_proj']
    return output, score


if __name__ == "__main__":
    key = jax.random.PRNGKey(0)
    mb, q_len, k_len, embed_dim = 2, 8, 10, 32

    kk, kq, kp1, kp2 = jax.random.split(key, 4)
    k_in = jax.random.normal(kk, (mb, k_len, embed_dim), jnp.float32)
    q_in = jax.random.normal(kq, (mb, q_len, embed_dim), jnp.float32)

    # Case 1: default score_function='dot_product', multi-head (n_head=2).
    n_head = 2
    hidden = embed_dim // n_head
    params = init_attention_params(kp1, embed_dim, hidden, embed_dim, n_head)
    out, score = attention_forward(k_in, q_in, params, n_head=n_head,
                                   hidden_dim=hidden, score_function='dot_product')
    jax.block_until_ready((out, score))
    ref_out, ref_score = _reference_forward(k_in, q_in, params, n_head=n_head,
                                            hidden_dim=hidden,
                                            score_function='dot_product')
    assert out.shape == (mb, q_len, embed_dim)
    assert score.shape == (n_head * mb, q_len, k_len)
    assert jnp.allclose(out, ref_out, rtol=1e-3, atol=1e-3), "out mismatch (dot_product)"
    assert jnp.allclose(score, ref_score, rtol=1e-3, atol=1e-3), "score mismatch (dot_product)"

    # Case 2: scaled_dot_product, single head.
    n_head = 1
    hidden = embed_dim // n_head
    params = init_attention_params(kp2, embed_dim, hidden, embed_dim, n_head)
    out, score = attention_forward(k_in, q_in, params, n_head=n_head,
                                   hidden_dim=hidden,
                                   score_function='scaled_dot_product')
    jax.block_until_ready((out, score))
    ref_out, ref_score = _reference_forward(k_in, q_in, params, n_head=n_head,
                                            hidden_dim=hidden,
                                            score_function='scaled_dot_product')
    assert jnp.allclose(out, ref_out, rtol=1e-3, atol=1e-3), "out mismatch (scaled)"
    assert jnp.allclose(score, ref_score, rtol=1e-3, atol=1e-3), "score mismatch (scaled)"

    print("KERNEL_OK")
</pallas_src>

<mosaic_0001>
module attributes {stable_mosaic.version = 11 : i64} {
  func.func @_linear_kernel(%arg0: i32, %arg1: i32, %arg2: i32, %arg3: memref<24x128xf32, #tpu.memory_space<vmem>>, %arg4: memref<128x128xf32, #tpu.memory_space<vmem>>, %arg5: memref<1x128xf32, #tpu.memory_space<vmem>>, %arg6: memref<24x128xf32, #tpu.memory_space<vmem>>, %arg7: memref<24x128xf32, #tpu.memory_space<vmem>>) attributes {dimension_semantics = [#tpu.dimension_semantics<parallel>, #tpu.dimension_semantics<parallel>, #tpu.dimension_semantics<arbitrary>], iteration_bounds = array<i64: 1, 1, 1>, scalar_prefetch = 0 : i64, scratch_operands = 1 : i64, tpu.core_type = #tpu.core_type<tc>, window_params = [{transform_indices = @transform_0, window_bounds = array<i64: 24, 128>}, {transform_indices = @transform_1, window_bounds = array<i64: 128, 128>}, {transform_indices = @transform_2, window_bounds = array<i64: 1, 128>}, {transform_indices = @transform_3, window_bounds = array<i64: 24, 128>}]} {
    %c0_i32 = arith.constant 0 : i32
    %0 = arith.cmpi eq, %arg2, %c0_i32 : i32
    %1 = arith.extui %0 : i1 to i32
    %c0_i32_0 = arith.constant 0 : i32
    %2 = arith.cmpi ne, %1, %c0_i32_0 : i32
    scf.if %2 {
      %cst_10 = arith.constant 0.000000e+00 : f32
      %12 = vector.broadcast %cst_10 : f32 to vector<24x128xf32>
      %c0_11 = arith.constant 0 : index
      %c0_12 = arith.constant 0 : index
      %13 = vector.load %arg7[%c0_11, %c0_12] : memref<24x128xf32, #tpu.memory_space<vmem>>, vector<24x128xf32>
      tpu.vector_store %arg7[%c0_11, %c0_12], %12 {strides = array<i32>} : memref<24x128xf32, #tpu.memory_space<vmem>>, vector<24x128xf32>,
    } else {
    }
    %c0 = arith.constant 0 : index
    %c0_1 = arith.constant 0 : index
    %3 = vector.load %arg7[%c0, %c0_1] : memref<24x128xf32, #tpu.memory_space<vmem>>, vector<24x128xf32>
    %c0_2 = arith.constant 0 : index
    %c0_3 = arith.constant 0 : index
    %4 = vector.load %arg3[%c0_2, %c0_3] : memref<24x128xf32, #tpu.memory_space<vmem>>, vector<24x128xf32>
    %c0_4 = arith.constant 0 : index
    %c0_5 = arith.constant 0 : index
    %5 = vector.load %arg4[%c0_4, %c0_5] : memref<128x128xf32, #tpu.memory_space<vmem>>, vector<128x128xf32>
    %cst = arith.constant dense<0.000000e+00> : vector<24x128xf32>
    %6 = tpu.matmul %4, %5, %cst {dimension_numbers = #tpu.dot_dimension_numbers<[1], [0], [0], [1], [0, 0, 1, 1], [], []>} : vector<24x128xf32>, vector<128x128xf32>, vector<24x128xf32> -> vector<24x128xf32>
    %7 = arith.addf %3, %6 : vector<24x128xf32>
    %c0_6 = arith.constant 0 : index
    %c0_7 = arith.constant 0 : index
    %8 = vector.load %arg7[%c0_6, %c0_7] : memref<24x128xf32, #tpu.memory_space<vmem>>, vector<24x128xf32>
    tpu.vector_store %arg7[%c0_6, %c0_7], %7 {strides = array<i32>} : memref<24x128xf32, #tpu.memory_space<vmem>>, vector<24x128xf32>,
    %c0_i32_8 = arith.constant 0 : i32
    %9 = arith.cmpi eq, %arg2, %c0_i32_8 : i32
    %10 = arith.extui %9 : i1 to i32
    %c0_i32_9 = arith.constant 0 : i32
    %11 = arith.cmpi ne, %10, %c0_i32_9 : i32
    scf.if %11 {
      %c0_10 = arith.constant 0 : index
      %c0_11 = arith.constant 0 : index
      %12 = vector.load %arg7[%c0_10, %c0_11] : memref<24x128xf32, #tpu.memory_space<vmem>>, vector<24x128xf32>
      %c0_12 = arith.constant 0 : index
      %c0_13 = arith.constant 0 : index
      %13 = vector.load %arg5[%c0_12, %c0_13] : memref<1x128xf32, #tpu.memory_space<vmem>>, vector<1x128xf32>
      %14 = vector.broadcast %13 : vector<1x128xf32> to vector<24x128xf32>
      %15 = arith.addf %12, %14 : vector<24x128xf32>
      %c0_14 = arith.constant 0 : index
      %c0_15 = arith.constant 0 : index
      %16 = vector.load %arg6[%c0_14, %c0_15] : memref<24x128xf32, #tpu.memory_space<vmem>>, vector<24x128xf32>
      tpu.vector_store %arg6[%c0_14, %c0_15], %15 {strides = array<i32>} : memref<24x128xf32, #tpu.memory_space<vmem>>, vector<24x128xf32>,
    } else {
    }
    return
  }
  func.func @transform_0(%arg0: i32, %arg1: i32, %arg2: i32) -> (i32, i32) {
    %c0_i32 = arith.constant 0 : i32
    return %arg0, %arg2 : i32, i32
  }
  func.func @transform_1(%arg0: i32, %arg1: i32, %arg2: i32) -> (i32, i32) {
    %c0_i32 = arith.constant 0 : i32
    return %arg2, %arg1 : i32, i32
  }
  func.func @transform_2(%arg0: i32, %arg1: i32, %arg2: i32) -> (i32, i32) {
    %c0_i32 = arith.constant 0 : i32
    %c0_i32_0 = arith.constant 0 : i32
    return %c0_i32, %arg1 : i32, i32
  }
  func.func @transform_3(%arg0: i32, %arg1: i32, %arg2: i32) -> (i32, i32) {
    %c0_i32 = arith.constant 0 : i32
    return %arg0, %arg1 : i32, i32
  }
}

</mosaic_0001>

<llo_original>
// kernel: tpu_custom_call.1
$region0: #{tpu_custom_call.1}
  #allocation0 [shape = 'u32[]', space=smem, size = 0x4, offset = 0x4, fixed_abs, tag = 'smem constant byte address 0x4 - core index']
  #allocation1 [shape = 'u32[72,128]{1,0:T(1,128)}', space=vmem, size = 0x9000, scoped, tag = 'internal scratch']
  #allocation2 [shape = 'f32[24,128]{1,0:T(8,128)}', space=vmem, size = 0x3000, scoped, tag = 'scratch operand']
  %s0 = inlined_call_operand.hbm [shape: f32[24,128], index: 0, kind: input, shape index: {}]
  %s1 = inlined_call_operand.hbm [shape: f32[128,128], index: 1, kind: input, shape index: {}]
  %s2 = inlined_call_operand.vmem [shape: f32[1,128], index: 2, kind: input, shape index: {}]
  %s3 = inlined_call_operand.hbm [shape: f32[24,128], index: 3, kind: output, shape index: {}]
  %s4 = sld [smem:[#allocation0]]
  $region38: #{tpu_custom_call.1} parent=0
    _
  %s6 = ssub.s32 1, %s4
  %s7 = scalar_select 0, %s6, %s4
  $region1: #{tpu_custom_call.1} parent=0
    #allocation3 [shape = 'u8[12288]{0}', space=vmem, size = 0x3000, scoped, tag = 'input window, operand 0, single buffered']
    #allocation4 [shape = 's32[1]{0}', space=sflag, size = 0x4, scoped, tag = 'scoped memory for tpu_custom_call.1']
    #allocation5 [shape = 's32[1]{0}', space=sflag, size = 0x4, scoped, tag = 'scoped memory for tpu_custom_call.1']
    #allocation6 [shape = 'u8[65536]{0}', space=vmem, size = 0x10000, scoped, tag = 'input window, operand 1, single buffered']
    #allocation7 [shape = 's32[1]{0}', space=sflag, size = 0x4, scoped, tag = 'scoped memory for tpu_custom_call.1']
    #allocation8 [shape = 'u8[12288]{0}', space=vmem, size = 0x3000, scoped, tag = 'output window, operand 0, single buffered']
    %8 = vsyncpa [#allocation4], 0
    %9 = vsyncpa [#allocation7], 0
    %10 = vsyncpa [#allocation5], 0
    // Predicated region
    $region2: #{tpu_custom_call.1} parent=1 // pred_check
      _
    $region3: #{tpu_custom_call.1} parent=1 // pred_check_branch
      %12 = sbr.rel (0) target = $region5
    $region4: #{tpu_custom_call.1} parent=1 // pred_region
      %14 = vsyncadd [#allocation4], 0
      %s15 = sshll.u32 %s0, 4
      %s16 = int_to_ptr.hbm [resolvable:$true] %s15
      %s17 = sshll.u32 [#allocation3], 4
      %s18 = int_to_ptr.vmem [resolvable:$true] %s17
      %23 = dma.hbm_to_vmem [thread:$0]  %s16, 384, %s18, [#allocation4], 128, 128, 8
    $region5: #{tpu_custom_call.1} parent=1 // pred_fallthru
      _
    // Predicated region
    $region6: #{tpu_custom_call.1} parent=1 // pred_check
      _
    $region7: #{tpu_custom_call.1} parent=1 // pred_check_branch
      %25 = sbr.rel (0) target = $region9
    $region8: #{tpu_custom_call.1} parent=1 // pred_region
      %27 = vsyncadd [#allocation7], 0
      %s28 = sshll.u32 %s1, 4
      %s29 = int_to_ptr.hbm [resolvable:$true] %s28
      %s30 = sshll.u32 [#allocation6], 4
      %s31 = int_to_ptr.vmem [resolvable:$true] %s30
      %36 = dma.hbm_to_vmem [thread:$0]  %s29, 2048, %s31, [#allocation7], 128, 128, 8
    $region9: #{tpu_custom_call.1} parent=1 // pred_fallthru
      _
    // Predicated region
    $region10: #{tpu_custom_call.1} parent=1 // pred_check
      _
    $region11: #{tpu_custom_call.1} parent=1 // pred_check_branch
      %38 = sbr.rel (0) target = $region13
    $region12: #{tpu_custom_call.1} parent=1 // pred_region
      _
    $region13: #{tpu_custom_call.1} parent=1 // pred_fallthru
      _
    // Predicated region
    $region14: #{tpu_custom_call.1} parent=1 // pred_check
      _
    $region15: #{tpu_custom_call.1} parent=1 // pred_check_branch
      %40 = sbr.rel (0) target = $region17
    $region16: #{tpu_custom_call.1} parent=1 // pred_region
      %42 = dma.done [#allocation4], 384
    $region17: #{tpu_custom_call.1} parent=1 // pred_fallthru
      _
    // Predicated region
    $region18: #{tpu_custom_call.1} parent=1 // pred_check
      _
    $region19: #{tpu_custom_call.1} parent=1 // pred_check_branch
      %44 = sbr.rel (0) target = $region21
    $region20: #{tpu_custom_call.1} parent=1 // pred_region
      %46 = dma.done [#allocation7], 2048
    $region21: #{tpu_custom_call.1} parent=1 // pred_fallthru
      _
    %p47 = scmp.eq.s32.totalorder 0, 0
    // Predicated region
    $region22: #{tpu_custom_call.1} parent=1 // pred_check
      %p48 = pneg %p47
    $region23: #{tpu_custom_call.1} parent=1 // pred_check_branch
      %50 = sbr.rel (%p48) target = $region25
    $region24: #{tpu_custom_call.1} parent=1 // pred_region
      %51 = vst [vmem:[#allocation2] sm:$0xff] 0.0
      %52 = vst [vmem:[#allocation2 + $0x8] sm:$0xff] 0.0
      %53 = vst [vmem:[#allocation2 + $0x10] sm:$0xff] 0.0
    $region25: #{tpu_custom_call.1} parent=1 // pred_fallthru
      _
    %v54 = vld [vmem:[#allocation2] sm:$0xff]
    %v55 = vld [vmem:[#allocation2 + $0x8] sm:$0xff]
    %v56 = vld [vmem:[#allocation2 + $0x10] sm:$0xff]
    %v57 = vld [vmem:[#allocation3] sm:$0xff]
    %v58 = vld [vmem:[#allocation3 + $0x8] sm:$0xff]
    %v59 = vld [vmem:[#allocation3 + $0x10] sm:$0xff]
    %v60 = vld [vmem:[#allocation6] sm:$0xff]
    %v61 = vld [vmem:[#allocation6 + $0x8] sm:$0xff]
    %v62 = vld [vmem:[#allocation6 + $0x10] sm:$0xff]
    %v63 = vld [vmem:[#allocation6 + $0x18] sm:$0xff]
    %v64 = vld [vmem:[#allocation6 + $0x20] sm:$0xff]
    %v65 = vld [vmem:[#allocation6 + $0x28] sm:$0xff]
    %v66 = vld [vmem:[#allocation6 + $0x30] sm:$0xff]
    %v67 = vld [vmem:[#allocation6 + $0x38] sm:$0xff]
    %v68 = vld [vmem:[#allocation6 + $0x40] sm:$0xff]
    %v69 = vld [vmem:[#allocation6 + $0x48] sm:$0xff]
    %v70 = vld [vmem:[#allocation6 + $0x50] sm:$0xff]
    %v71 = vld [vmem:[#allocation6 + $0x58] sm:$0xff]
    %v72 = vld [vmem:[#allocation6 + $0x60] sm:$0xff]
    %v73 = vld [vmem:[#allocation6 + $0x68] sm:$0xff]
    %v74 = vld [vmem:[#allocation6 + $0x70] sm:$0xff]
    %v75 = vld [vmem:[#allocation6 + $0x78] sm:$0xff]
    %76 = vmatpush.msra.mxu0 %v75
    %77 = vmatpush.msra.mxu0 %v74
    %78 = vmatpush.msra.mxu0 %v73
    %79 = vmatpush.msra.mxu0 %v72
    %80 = vmatpush.msra.mxu0 %v71
    %81 = vmatpush.msra.mxu0 %v70
    %82 = vmatpush.msra.mxu0 %v69
    %83 = vmatpush.msra.mxu0 %v68
    %84 = vmatpush.msra.mxu0 %v67
    %85 = vmatpush.msra.mxu0 %v66
    %86 = vmatpush.msra.mxu0 %v65
    %87 = vmatpush.msra.mxu0 %v64
    %88 = vmatpush.msra.mxu0 %v63
    %89 = vmatpush.msra.mxu0 %v62
    %90 = vmatpush.msra.mxu0 %v61
    %91 = vmatpush.msra.mxu0 %v60
    %92 = vmatmul.f32.gmra.mxu0 %v57
    %v93 = vpop.f32.mrf.mxu0
    %v94 = vadd.f32 0.0, %v93
    %95 = vmatmul.f32.gmra.mxu0 %v58
    %v96 = vpop.f32.mrf.mxu0
    %v97 = vadd.f32 0.0, %v96
    %98 = vmatmul.f32.gmra.mxu0 %v59
    %v99 = vpop.f32.mrf.mxu0
    %v100 = vadd.f32 0.0, %v99
    %101 = vdwg.mxu0
    %v102 = vadd.f32 %v54, %v94
    %v103 = vadd.f32 %v55, %v97
    %v104 = vadd.f32 %v56, %v100
    %105 = vst [vmem:[#allocation2] sm:$0xff] %v102
    %106 = vst [vmem:[#allocation2 + $0x8] sm:$0xff] %v103
    %107 = vst [vmem:[#allocation2 + $0x10] sm:$0xff] %v104
    // Predicated region
    $region26: #{tpu_custom_call.1} parent=1 // pred_check
      %p108 = pneg %p47
    $region27: #{tpu_custom_call.1} parent=1 // pred_check_branch
      %110 = sbr.rel (%p108) target = $region29
    $region28: #{tpu_custom_call.1} parent=1 // pred_region
      %v111 = vld [vmem:[#allocation2] sm:$0xff]
      %v112 = vld [vmem:[#allocation2 + $0x8] sm:$0xff]
      %v113 = vld [vmem:[#allocation2 + $0x10] sm:$0xff]
      %v114 = vld [vmem:[%s2] sm:$0x1]
      %v116 = vperm.slane %v114, 0
      %v118 = vadd.f32 %v111, %v116
      %v119 = vadd.f32 %v112, %v116
      %v120 = vadd.f32 %v113, %v116
      %121 = vst [vmem:[#allocation8] sm:$0xff] %v118
      %122 = vst [vmem:[#allocation8 + $0x8] sm:$0xff] %v119
      %123 = vst [vmem:[#allocation8 + $0x10] sm:$0xff] %v120
    $region29: #{tpu_custom_call.1} parent=1 // pred_fallthru
      _
    // Predicated region
    $region30: #{tpu_custom_call.1} parent=1 // pred_check
      _
    $region31: #{tpu_custom_call.1} parent=1 // pred_check_branch
      %125 = sbr.rel (0) target = $region33
    $region32: #{tpu_custom_call.1} parent=1 // pred_region
      %127 = vsyncadd [#allocation5], 0
      %s128 = sshll.u32 [#allocation8], 4
      %s129 = int_to_ptr.vmem [resolvable:$true] %s128
      %s130 = sshll.u32 %s3, 4
      %s131 = int_to_ptr.hbm [resolvable:$true] %s130
      %136 = dma.vmem_to_hbm [thread:$0]  %s129, 384, %s131, [#allocation5], 128, 128, 8
    $region33: #{tpu_custom_call.1} parent=1 // pred_fallthru
      _
    // Predicated region
    $region34: #{tpu_custom_call.1} parent=1 // pred_check
      _
    $region35: #{tpu_custom_call.1} parent=1 // pred_check_branch
      %138 = sbr.rel (0) target = $region37
    $region36: #{tpu_custom_call.1} parent=1 // pred_region
      %140 = dma.done [#allocation5], 384
    $region37: #{tpu_custom_call.1} parent=1 // pred_fallthru
      _
    %141 = vsyncpa [#allocation4], 1
    %142 = vsyncpa [#allocation7], 1
    %143 = vsyncpa [#allocation5], 1

</llo_original>
